<compile_context>
chip_gen: v7x
topology: tpu7x:2x2x1
jax: 0.10.0
libtpu: 0.0.40
codegen_flags: <defaults>
</compile_context>

<pallas_src>
import functools

import jax
import jax.numpy as jnp
from jax.experimental import pallas as pl
from jax.experimental.pallas import tpu as pltpu


def _ce_kernel(x_ref, t_ref, o_ref, loss_acc, cnt_acc, *,
               C, HW, tile, steps, ignore_index):
    s = pl.program_id(0)   # split           ("parallel")
    n = pl.program_id(1)   # image in batch  ("arbitrary")
    k = pl.program_id(2)   # pixel tile      ("arbitrary", reduction-like)

    @pl.when((n == 0) & (k == 0))
    def _():
        loss_acc[...] = jnp.zeros_like(loss_acc)
        cnt_acc[...] = jnp.zeros_like(cnt_acc)

    x = x_ref[...].astype(jnp.float32)          # (C, tile)   logits
    t = t_ref[...]                              # (1, tile)   int32 targets

    # Stable log-sum-exp over the channel (sublane) axis.
    m = jnp.max(x, axis=0, keepdims=True)                                   # (1, tile)
    lse = jnp.log(jnp.sum(jnp.exp(x - m), axis=0, keepdims=True)) + m       # (1, tile)

    # Gather x[target] via one-hot select over channels.  Ignored / garbage
    # targets match no channel -> 0; those lanes are masked out below anyway.
    ch = jax.lax.broadcasted_iota(jnp.int32, (C, tile), 0)
    x_t = jnp.sum(jnp.where(ch == t, x, 0.0), axis=0, keepdims=True)        # (1, tile)

    # Validity: the lane's global pixel index must lie inside the image
    # (covers the partial tail tile AND the clamped fully-out-of-range tiles
    # of the last split) and the target must not be ignore_index.
    pix = (s * steps + k) * tile + jax.lax.broadcasted_iota(
        jnp.int32, (1, tile), 1)
    valid = (pix < HW) & (t != ignore_index)

    loss = jnp.where(valid, lse - x_t, 0.0)     # -log_softmax(x)[t]
    cnt = jnp.where(valid, 1.0, 0.0)

    # Tile -> scalar reduce, broadcast-accumulated into tiny fixed scratch
    # (every lane of the accumulator carries the same running total).
    loss_acc[...] += jnp.sum(loss)
    cnt_acc[...] += jnp.sum(cnt)

    @pl.when((n == pl.num_programs(1) - 1) & (k == pl.num_programs(2) - 1))
    def _():
        o_ref[0:1, :] = loss_acc[...]           # row 0: per-split loss sum
        o_ref[1:2, :] = cnt_acc[...]            # row 1: per-split valid count


def _default_num_splits():
    """2 splits only on parts with two TensorCores per Pallas device."""
    try:
        kind = jax.devices()[0].device_kind.lower()
    except Exception:
        return 1
    if "v7" in kind:
        return 2
    if ("v4" in kind or "v5p" in kind) and "lite" not in kind:   # megacore
        return 2
    return 1


def cross_entropy_loss_2d(inputs, targets, *, ignore_index=-1,
                          tile_pixels=None, num_splits=None):
    """inputs: (N, C, H, W) logits (f32/bf16); targets: (N, H, W) int class ids.

    Returns the scalar mean NLL over pixels whose target != ignore_index,
    i.e. nn.NLLLoss(weight=None, ignore_index)(log_softmax(inputs, 1), targets).
    """
    # TODO(synk): optional per-class `weight` vector (module default weight=None)
    # is not implemented.  Also note: targets >= C produce a finite (wrong)
    # loss instead of raising like PyTorch does.
    N, C, H, W = inputs.shape
    assert targets.shape == (N, H, W)
    HW = H * W

    # Free reshapes only — no transpose, no pads, no HBM round-trips.
    x = inputs.reshape(N, C, HW)
    t = targets.reshape(N, 1, HW).astype(jnp.int32)

    if tile_pixels is None:
        itemsize = jnp.dtype(inputs.dtype).itemsize
        # Target ~2 MiB of logits per grid step so the ~0.35 us fixed per-step
        # overhead is well amortized (raise further on v7x if desired).
        tile_pixels = int((2 * 1024 * 1024) // max(1, C * itemsize))
        tile_pixels = max(1024, min(tile_pixels, 32768))
    if tile_pixels >= HW:
        tile = HW                                   # full-dim block: always legal
    else:
        tile = max(128, (tile_pixels // 128) * 128)  # lane-dense tile

    tiles_per_image = pl.cdiv(HW, tile)

    if num_splits is None:
        num_splits = _default_num_splits()
    num_splits = max(1, min(num_splits, tiles_per_image))
    steps = pl.cdiv(tiles_per_image, num_splits)
    last_tile = tiles_per_image - 1

    # Clamp the block index so the last split's over-range steps DMA a valid
    # tile; their lanes are masked in-kernel via the `pix < HW` check.
    def x_index(s, n, k):
        return (n, 0, jnp.minimum(s * steps + k, last_tile))

    def t_index(s, n, k):
        return (n, 0, jnp.minimum(s * steps + k, last_tile))

    out = pl.pallas_call(
        functools.partial(_ce_kernel, C=C, HW=HW, tile=tile, steps=steps,
                          ignore_index=ignore_index),
        out_shape=jax.ShapeDtypeStruct((num_splits, 2, 128), jnp.float32),
        grid_spec=pltpu.PrefetchScalarGridSpec(
            num_scalar_prefetch=0,
            grid=(num_splits, N, steps),
            in_specs=[
                pl.BlockSpec((None, C, tile), x_index),   # logits: C sublanes x tile lanes
                pl.BlockSpec((None, 1, tile), t_index),   # targets: lane-dense
            ],
            out_specs=pl.BlockSpec((None, 2, 128), lambda s, n, k: (s, 0, 0)),
            scratch_shapes=[
                pltpu.VMEM((1, 128), jnp.float32),   # running loss sum
                pltpu.VMEM((1, 128), jnp.float32),   # running valid count
            ],
        ),
        compiler_params=pltpu.CompilerParams(
            dimension_semantics=("parallel", "arbitrary", "arbitrary")),
    )(x, t)

    loss_sum = jnp.sum(out[:, 0, 0])
    valid_cnt = jnp.sum(out[:, 1, 0])
    # NB: an all-ignored batch yields 0/0 = NaN, matching the PyTorch module.
    return loss_sum / valid_cnt


def _reference(inputs, targets, ignore_index=-1):
    # Pure-JAX mirror of the PyTorch forward, for correctness checking.
    x = jnp.transpose(inputs, (0, 2, 3, 1)).astype(jnp.float32)  # (N, H, W, C)
    logp = jax.nn.log_softmax(x, axis=-1)
    valid = targets != ignore_index
    t_safe = jnp.where(valid, targets, 0).astype(jnp.int32)
    picked = jnp.take_along_axis(logp, t_safe[..., None], axis=-1)[..., 0]
    loss = jnp.where(valid, -picked, 0.0)
    return jnp.sum(loss) / jnp.sum(valid.astype(jnp.float32))


if __name__ == "__main__":
    key = jax.random.PRNGKey(0)
    k1, k2, k3 = jax.random.split(key, 3)
    # Small shapes; H=W=18 -> HW=324 is NOT a multiple of the 128-pixel test
    # tile, so the run exercises the partial tail tile and the clamped
    # fully-masked overflow tile of the second split.
    N, C, H, W = 2, 4, 18, 18
    logits = jax.random.normal(k1, (N, C, H, W), dtype=jnp.float32)
    targets = jax.random.randint(k2, (N, H, W), 0, C, dtype=jnp.int32)
    ignore_mask = jax.random.bernoulli(k3, 0.1, (N, H, W))
    targets = jnp.where(ignore_mask, -1, targets)

    ref = jax.block_until_ready(_reference(logits, targets, ignore_index=-1))

    # 1) Small tile + 2 splits: multi-step accumulation, tail masking, clamping.
    loss = cross_entropy_loss_2d(logits, targets, ignore_index=-1,
                                 tile_pixels=128, num_splits=2)
    loss = jax.block_until_ready(loss)
    assert jnp.allclose(loss, ref, atol=1e-5, rtol=1e-4), (loss, ref)

    # 2) Default (auto) tiling: one full-image tile per image, auto splits.
    loss2 = jax.block_until_ready(
        cross_entropy_loss_2d(logits, targets, ignore_index=-1))
    assert jnp.allclose(loss2, ref, atol=1e-5, rtol=1e-4), (loss2, ref)

    print("KERNEL_OK")
</pallas_src>

<mosaic_0001>
module attributes {stable_mosaic.version = 11 : i64} {
  func.func @_ce_kernel(%arg0: i32, %arg1: i32, %arg2: i32, %arg3: memref<1x4x128xf32, #tpu.memory_space<vmem>>, %arg4: memref<1x1x128xi32, #tpu.memory_space<vmem>>, %arg5: memref<1x2x128xf32, #tpu.memory_space<vmem>>, %arg6: memref<1x128xf32, #tpu.memory_space<vmem>>, %arg7: memref<1x128xf32, #tpu.memory_space<vmem>>) attributes {dimension_semantics = [#tpu.dimension_semantics<parallel>, #tpu.dimension_semantics<arbitrary>, #tpu.dimension_semantics<arbitrary>], iteration_bounds = array<i64: 2, 2, 2>, scalar_prefetch = 0 : i64, scratch_operands = 2 : i64, tpu.core_type = #tpu.core_type<tc>, window_params = [{transform_indices = @transform_0, window_bounds = array<i64: 1, 4, 128>}, {transform_indices = @transform_1, window_bounds = array<i64: 1, 1, 128>}, {transform_indices = @transform_2, window_bounds = array<i64: 1, 2, 128>}]} {
    %c0_i32 = arith.constant 0 : i32
    %0 = arith.cmpi eq, %arg1, %c0_i32 : i32
    %c0_i32_0 = arith.constant 0 : i32
    %1 = arith.cmpi eq, %arg2, %c0_i32_0 : i32
    %2 = arith.andi %0, %1 : i1
    %3 = arith.extui %2 : i1 to i32
    %c0_i32_1 = arith.constant 0 : i32
    %4 = arith.cmpi ne, %3, %c0_i32_1 : i32
    scf.if %4 {
      %cst_25 = arith.constant 0.000000e+00 : f32
      %63 = vector.broadcast %cst_25 : f32 to vector<1x128xf32>
      %c0_26 = arith.constant 0 : index
      %c0_27 = arith.constant 0 : index
      %64 = vector.load %arg6[%c0_26, %c0_27] : memref<1x128xf32, #tpu.memory_space<vmem>>, vector<1x128xf32>
      tpu.vector_store %arg6[%c0_26, %c0_27], %63 {strides = array<i32>} : memref<1x128xf32, #tpu.memory_space<vmem>>, vector<1x128xf32>,
      %cst_28 = arith.constant 0.000000e+00 : f32
      %65 = vector.broadcast %cst_28 : f32 to vector<1x128xf32>
      %c0_29 = arith.constant 0 : index
      %c0_30 = arith.constant 0 : index
      %66 = vector.load %arg7[%c0_29, %c0_30] : memref<1x128xf32, #tpu.memory_space<vmem>>, vector<1x128xf32>
      tpu.vector_store %arg7[%c0_29, %c0_30], %65 {strides = array<i32>} : memref<1x128xf32, #tpu.memory_space<vmem>>, vector<1x128xf32>,
    } else {
    }
    %c0 = arith.constant 0 : index
    %c0_2 = arith.constant 0 : index
    %c0_3 = arith.constant 0 : index
    %5 = vector.load %arg3[%c0, %c0_2, %c0_3] : memref<1x4x128xf32, #tpu.memory_space<vmem>>, vector<1x4x128xf32>
    %6 = vector.shape_cast %5 : vector<1x4x128xf32> to vector<4x128xf32>
    %c0_4 = arith.constant 0 : index
    %c0_5 = arith.constant 0 : index
    %c0_6 = arith.constant 0 : index
    %7 = vector.load %arg4[%c0_4, %c0_5, %c0_6] : memref<1x1x128xi32, #tpu.memory_space<vmem>>, vector<1x1x128xi32>
    %8 = vector.shape_cast %7 : vector<1x1x128xi32> to vector<1x128xi32>
    %cst = arith.constant dense<0xFF800000> : vector<128xf32>
    %9 = vector.multi_reduction <maximumf>, %6, %cst [0] : vector<4x128xf32> to vector<128xf32>
    %10 = vector.shape_cast %9 : vector<128xf32> to vector<1x128xf32>
    %11 = vector.broadcast %10 : vector<1x128xf32> to vector<4x128xf32>
    %12 = arith.subf %6, %11 : vector<4x128xf32>
    %13 = math.exp %12 : vector<4x128xf32>
    %cst_7 = arith.constant dense<0.000000e+00> : vector<128xf32>
    %14 = vector.multi_reduction <add>, %13, %cst_7 [0] : vector<4x128xf32> to vector<128xf32>
    %15 = vector.shape_cast %14 : vector<128xf32> to vector<1x128xf32>
    %16 = math.log %15 : vector<1x128xf32>
    %17 = arith.addf %16, %10 : vector<1x128xf32>
    %18 = tpu.iota {dimensions = array<i32: 0>} : vector<4x128xi32>
    %19 = vector.broadcast %8 : vector<1x128xi32> to vector<4x128xi32>
    %20 = arith.cmpi eq, %18, %19 : vector<4x128xi32>
    %cst_8 = arith.constant 0.000000e+00 : f32
    %21 = vector.broadcast %cst_8 : f32 to vector<4x128xf32>
    %22 = arith.select %20, %6, %21 : vector<4x128xi1>, vector<4x128xf32>
    %cst_9 = arith.constant dense<0.000000e+00> : vector<128xf32>
    %23 = vector.multi_reduction <add>, %22, %cst_9 [0] : vector<4x128xf32> to vector<128xf32>
    %24 = vector.shape_cast %23 : vector<128xf32> to vector<1x128xf32>
    %c2_i32 = arith.constant 2 : i32
    %25 = arith.muli %arg0, %c2_i32 : i32
    %26 = arith.addi %25, %arg2 : i32
    %c128_i32 = arith.constant 128 : i32
    %27 = arith.muli %26, %c128_i32 : i32
    %28 = tpu.iota {dimensions = array<i32: 1>} : vector<1x128xi32>
    %29 = vector.broadcast %27 : i32 to vector<1x128xi32>
    %30 = arith.addi %29, %28 : vector<1x128xi32>
    %c324_i32 = arith.constant 324 : i32
    %31 = vector.broadcast %c324_i32 : i32 to vector<1x128xi32>
    %32 = arith.cmpi slt, %30, %31 : vector<1x128xi32>
    %c-1_i32 = arith.constant -1 : i32
    %33 = vector.broadcast %c-1_i32 : i32 to vector<1x128xi32>
    %34 = arith.cmpi ne, %8, %33 : vector<1x128xi32>
    %35 = arith.andi %32, %34 : vector<1x128xi1>
    %36 = arith.subf %17, %24 : vector<1x128xf32>
    %cst_10 = arith.constant 0.000000e+00 : f32
    %37 = vector.broadcast %cst_10 : f32 to vector<1x128xf32>
    %38 = arith.select %35, %36, %37 : vector<1x128xi1>, vector<1x128xf32>
    %cst_11 = arith.constant 1.000000e+00 : f32
    %cst_12 = arith.constant 0.000000e+00 : f32
    %39 = vector.broadcast %cst_11 : f32 to vector<1x128xf32>
    %40 = vector.broadcast %cst_12 : f32 to vector<1x128xf32>
    %41 = arith.select %35, %39, %40 : vector<1x128xi1>, vector<1x128xf32>
    %c0_13 = arith.constant 0 : index
    %c0_14 = arith.constant 0 : index
    %42 = vector.load %arg6[%c0_13, %c0_14] : memref<1x128xf32, #tpu.memory_space<vmem>>, vector<1x128xf32>
    %43 = vector.shape_cast %38 : vector<1x128xf32> to vector<1x1x128xf32>
    %cst_15 = arith.constant dense<0.000000e+00> : vector<1xf32>
    %44 = vector.multi_reduction <add>, %43, %cst_15 [1, 2] : vector<1x1x128xf32> to vector<1xf32>
    %45 = vector.shape_cast %44 : vector<1xf32> to vector<1x1x1xf32>
    %46 = vector.extract %45[0, 0, 0] : f32 from vector<1x1x1xf32>
    %47 = vector.broadcast %46 : f32 to vector<1x128xf32>
    %48 = arith.addf %42, %47 : vector<1x128xf32>
    %c0_16 = arith.constant 0 : index
    %c0_17 = arith.constant 0 : index
    %49 = vector.load %arg6[%c0_16, %c0_17] : memref<1x128xf32, #tpu.memory_space<vmem>>, vector<1x128xf32>
    tpu.vector_store %arg6[%c0_16, %c0_17], %48 {strides = array<i32>} : memref<1x128xf32, #tpu.memory_space<vmem>>, vector<1x128xf32>,
    %c0_18 = arith.constant 0 : index
    %c0_19 = arith.constant 0 : index
    %50 = vector.load %arg7[%c0_18, %c0_19] : memref<1x128xf32, #tpu.memory_space<vmem>>, vector<1x128xf32>
    %51 = vector.shape_cast %41 : vector<1x128xf32> to vector<1x1x128xf32>
    %cst_20 = arith.constant dense<0.000000e+00> : vector<1xf32>
    %52 = vector.multi_reduction <add>, %51, %cst_20 [1, 2] : vector<1x1x128xf32> to vector<1xf32>
    %53 = vector.shape_cast %52 : vector<1xf32> to vector<1x1x1xf32>
    %54 = vector.extract %53[0, 0, 0] : f32 from vector<1x1x1xf32>
    %55 = vector.broadcast %54 : f32 to vector<1x128xf32>
    %56 = arith.addf %50, %55 : vector<1x128xf32>
    %c0_21 = arith.constant 0 : index
    %c0_22 = arith.constant 0 : index
    %57 = vector.load %arg7[%c0_21, %c0_22] : memref<1x128xf32, #tpu.memory_space<vmem>>, vector<1x128xf32>
    tpu.vector_store %arg7[%c0_21, %c0_22], %56 {strides = array<i32>} : memref<1x128xf32, #tpu.memory_space<vmem>>, vector<1x128xf32>,
    %c1_i32 = arith.constant 1 : i32
    %58 = arith.cmpi eq, %arg1, %c1_i32 : i32
    %c1_i32_23 = arith.constant 1 : i32
    %59 = arith.cmpi eq, %arg2, %c1_i32_23 : i32
    %60 = arith.andi %58, %59 : i1
    %61 = arith.extui %60 : i1 to i32
    %c0_i32_24 = arith.constant 0 : i32
    %62 = arith.cmpi ne, %61, %c0_i32_24 : i32
    scf.if %62 {
      %c0_25 = arith.constant 0 : index
      %c0_26 = arith.constant 0 : index
      %63 = vector.load %arg6[%c0_25, %c0_26] : memref<1x128xf32, #tpu.memory_space<vmem>>, vector<1x128xf32>
      %c0_27 = arith.constant 0 : index
      %c0_28 = arith.constant 0 : index
      %c0_29 = arith.constant 0 : index
      %64 = vector.load %arg5[%c0_27, %c0_28, %c0_29] : memref<1x2x128xf32, #tpu.memory_space<vmem>>, vector<1x1x128xf32>
      %65 = vector.shape_cast %64 : vector<1x1x128xf32> to vector<1x128xf32>
      %66 = vector.shape_cast %63 : vector<1x128xf32> to vector<1x1x128xf32>
      tpu.vector_store %arg5[%c0_27, %c0_28, %c0_29], %66 {strides = array<i32>} : memref<1x2x128xf32, #tpu.memory_space<vmem>>, vector<1x1x128xf32>,
      %c0_30 = arith.constant 0 : index
      %c0_31 = arith.constant 0 : index
      %67 = vector.load %arg7[%c0_30, %c0_31] : memref<1x128xf32, #tpu.memory_space<vmem>>, vector<1x128xf32>
      %c0_32 = arith.constant 0 : index
      %c1 = arith.constant 1 : index
      %c0_33 = arith.constant 0 : index
      %68 = vector.load %arg5[%c0_32, %c1, %c0_33] : memref<1x2x128xf32, #tpu.memory_space<vmem>>, vector<1x1x128xf32>
      %69 = vector.shape_cast %68 : vector<1x1x128xf32> to vector<1x128xf32>
      %70 = vector.shape_cast %67 : vector<1x128xf32> to vector<1x1x128xf32>
      tpu.vector_store %arg5[%c0_32, %c1, %c0_33], %70 {strides = array<i32>} : memref<1x2x128xf32, #tpu.memory_space<vmem>>, vector<1x1x128xf32>,
    } else {
    }
    return
  }
  func.func @transform_0(%arg0: i32, %arg1: i32, %arg2: i32) -> (i32, i32, i32) {
    %c2_i32 = arith.constant 2 : i32
    %0 = arith.muli %arg0, %c2_i32 : i32
    %1 = arith.addi %0, %arg2 : i32
    %c2_i32_0 = arith.constant 2 : i32
    %2 = arith.minsi %1, %c2_i32_0 : i32
    %c0_i32 = arith.constant 0 : i32
    %c0_i32_1 = arith.constant 0 : i32
    return %arg1, %c0_i32, %2 : i32, i32, i32
  }
  func.func @transform_1(%arg0: i32, %arg1: i32, %arg2: i32) -> (i32, i32, i32) {
    %c2_i32 = arith.constant 2 : i32
    %0 = arith.muli %arg0, %c2_i32 : i32
    %1 = arith.addi %0, %arg2 : i32
    %c2_i32_0 = arith.constant 2 : i32
    %2 = arith.minsi %1, %c2_i32_0 : i32
    %c0_i32 = arith.constant 0 : i32
    %c0_i32_1 = arith.constant 0 : i32
    return %arg1, %c0_i32, %2 : i32, i32, i32
  }
  func.func @transform_2(%arg0: i32, %arg1: i32, %arg2: i32) -> (i32, i32, i32) {
    %c0_i32 = arith.constant 0 : i32
    %c0_i32_0 = arith.constant 0 : i32
    %c0_i32_1 = arith.constant 0 : i32
    return %arg0, %c0_i32, %c0_i32_0 : i32, i32, i32
  }
}

</mosaic_0001>

<llo_original>
// kernel: tpu_custom_call.1
$region0: #{tpu_custom_call.1}
  #allocation0 [shape = 'u32[]', space=smem, size = 0x4, offset = 0x4, fixed_abs, tag = 'smem constant byte address 0x4 - core index']
  #allocation1 [shape = 'u32[144,128]{1,0:T(1,128)}', space=vmem, size = 0x12000, scoped, tag = 'internal scratch']
  #allocation2 [shape = 'f32[1,128]{1,0:T(1,128)}', space=vmem, size = 0x200, scoped, tag = 'scratch operand']
  #allocation3 [shape = 'f32[1,128]{1,0:T(1,128)}', space=vmem, size = 0x200, scoped, tag = 'scratch operand']
  %s0 = inlined_call_operand.hbm [shape: f32[2,4,324], index: 0, kind: input, shape index: {}]
  %s1 = inlined_call_operand.hbm [shape: s32[2,1,324], index: 1, kind: input, shape index: {}]
  %s2 = inlined_call_operand.hbm [shape: f32[2,2,128], index: 2, kind: output, shape index: {}]
  %s3 = sld [smem:[#allocation0]]
  $region57: #{tpu_custom_call.1} parent=0
    _
  %s5 = ssub.s32 1, %s3
  %s6 = scalar_select 0, %s5, %s3
  $region1: #{tpu_custom_call.1} parent=0
    #allocation4 [shape = 'u8[4096]{0}', space=vmem, size = 0x1000, scoped, tag = 'input window, operand 0']
    #allocation5 [shape = 's32[2]{0}', space=sflag, size = 0x8, scoped, tag = 'scoped memory for tpu_custom_call.1']
    #allocation6 [shape = 's32[2]{0}', space=sflag, size = 0x8, scoped, tag = 'scoped memory for tpu_custom_call.1']
    #allocation7 [shape = 'u8[1024]{0}', space=vmem, size = 0x400, scoped, tag = 'input window, operand 1']
    #allocation8 [shape = 's32[2]{0}', space=sflag, size = 0x8, scoped, tag = 'scoped memory for tpu_custom_call.1']
    #allocation9 [shape = 'u8[2048]{0}', space=vmem, size = 0x800, scoped, tag = 'output window, operand 0']
    %7 = vsyncpa [#allocation5], 0
    %s8 = scalar_lea.sflag [#allocation5], 1
    %9 = vsyncpa %s8, 0
    %10 = vsyncpa [#allocation8], 0
    %s11 = scalar_lea.sflag [#allocation8], 1
    %12 = vsyncpa %s11, 0
    %13 = vsyncpa [#allocation6], 0
    %s14 = scalar_lea.sflag [#allocation6], 1
    %15 = vsyncpa %s14, 0
    loop: start=0, step=1, limit=10
    $region2: #{tpu_custom_call.1} parent=1 // loop_pre_header
      _
    $region3: #{tpu_custom_call.1} parent=1 // loop_header
      %s17 = sphi 0, %s21
      %p18 = scmp.ge.s32.totalorder %s17, 10
      %s24 = sphi 0, %s43
      %s25 = sphi 0, %s39
      %s26 = sphi 0, %s35
      %s27 = sphi 0, %s24
      %s28 = sphi 0, %s25
      %s29 = sphi 0, %s26
      %s30 = sphi 0, %s27
      %s31 = sphi 0, %s28
      %s32 = sphi 0, %s29
      %s56 = sphi 0, %s58
      %s59 = sphi 0, %s56
      %s60 = sphi 0, %s59
      %s76 = sphi 0, %s60
      %s92 = sphi 0, %s94
      %s95 = sphi 0, %s92
      %s96 = sphi 0, %s95
      %s112 = sphi 0, %s96
      %s118 = sphi 0, %s120
      %s121 = sphi 0, %s118
      %s122 = sphi 0, %s121
      %s138 = sphi 0, %s122
    $region4: #{tpu_custom_call.1} parent=1 // loop_header_branch
      %20 = sbr.rel (%p18) target = $region8
    $region5: #{tpu_custom_call.1} parent=1 // loop_body
      %s22 = ssub.s32 %s17, 1
      %s23 = ssub.s32 %s17, 2
      %s33 = sadd.s32 1, %s26
      %p34 = scmp.ge.s32.totalorder %s33, 2
      %s35 = scalar_select %p34, 0, %s33
      %s36 = sadd.s32 1, %s25
      %s37 = scalar_select %p34, %s36, %s25
      %p38 = scmp.ge.s32.totalorder %s37, 2
      %s39 = scalar_select %p38, 0, %s37
      %s40 = sadd.s32 1, %s24
      %s41 = scalar_select %p38, %s40, %s24
      %p42 = scmp.ge.s32.totalorder %s41, 2
      %s43 = scalar_select %p42, 0, %s41
      %s44 = smul.u32 %s24, 2
      %s45 = sadd.s32 %s44, %s26
      %p46 = scmp.lt.s32.totalorder %s45, 2
      %s47 = scalar_select %p46, %s45, 2
      %s48 = smul.u32 %s43, 2
      %s49 = sadd.s32 %s48, %s35
      %p50 = scmp.lt.s32.totalorder %s49, 2
      %s51 = scalar_select %p50, %s49, 2
      %s52 = ssub.s32 %s25, %s39
      %s53 = ssub.s32 %s47, %s51
      %s54 = sor.u32 %s52, %s53
      %p55 = scmp.eq.s32.totalorder %s54, 0
      %s57 = sadd.s32 %s56, 1
      %s58 = scalar_select %p55, %s56, %s57
      %p61 = pneg %p55
      %p62 = scmp.eq.s32.totalorder %s17, 7
      %p63 = por %p61, %p62
      %p64 = scmp.ne.s32.totalorder %s56, %s59
      %p65 = scmp.eq.s32.totalorder %s17, 0
      %p66 = por %p64, %p65
      %p67 = scmp.ne.s32.totalorder %s56, %s59
      %p68 = scmp.eq.s32.totalorder %s22, 7
      %p69 = por %p67, %p68
      %p70 = scmp.ne.s32.totalorder %s59, %s60
      %p71 = scmp.eq.s32.totalorder %s22, 0
      %p72 = por %p70, %p71
      %p73 = scmp.ne.s32.totalorder %s59, %s60
      %p74 = scmp.eq.s32.totalorder %s23, 7
      %p75 = por %p73, %p74
      %p77 = scmp.ne.s32.totalorder %s60, %s76
      %p78 = scmp.eq.s32.totalorder %s23, 0
      %p79 = por %p77, %p78
      %s80 = smul.u32 %s24, 2
      %s81 = sadd.s32 %s80, %s26
      %p82 = scmp.lt.s32.totalorder %s81, 2
      %s83 = scalar_select %p82, %s81, 2
      %s84 = smul.u32 %s43, 2
      %s85 = sadd.s32 %s84, %s35
      %p86 = scmp.lt.s32.totalorder %s85, 2
      %s87 = scalar_select %p86, %s85, 2
      %s88 = ssub.s32 %s25, %s39
      %s89 = ssub.s32 %s83, %s87
      %s90 = sor.u32 %s88, %s89
      %p91 = scmp.eq.s32.totalorder %s90, 0
      %s93 = sadd.s32 %s92, 1
      %s94 = scalar_select %p91, %s92, %s93
      %p97 = pneg %p91
      %p98 = scmp.eq.s32.totalorder %s17, 7
      %p99 = por %p97, %p98
      %p100 = scmp.ne.s32.totalorder %s92, %s95
      %p101 = scmp.eq.s32.totalorder %s17, 0
      %p102 = por %p100, %p101
      %p103 = scmp.ne.s32.totalorder %s92, %s95
      %p104 = scmp.eq.s32.totalorder %s22, 7
      %p105 = por %p103, %p104
      %p106 = scmp.ne.s32.totalorder %s95, %s96
      %p107 = scmp.eq.s32.totalorder %s22, 0
      %p108 = por %p106, %p107
      %p109 = scmp.ne.s32.totalorder %s95, %s96
      %p110 = scmp.eq.s32.totalorder %s23, 7
      %p111 = por %p109, %p110
      %p113 = scmp.ne.s32.totalorder %s96, %s112
      %p114 = scmp.eq.s32.totalorder %s23, 0
      %p115 = por %p113, %p114
      %s116 = ssub.s32 %s24, %s43
      %p117 = scmp.eq.s32.totalorder %s116, 0
      %s119 = sadd.s32 %s118, 1
      %s120 = scalar_select %p117, %s118, %s119
      %p123 = pneg %p117
      %p124 = scmp.eq.s32.totalorder %s17, 7
      %p125 = por %p123, %p124
      %p126 = scmp.ne.s32.totalorder %s118, %s121
      %p127 = scmp.eq.s32.totalorder %s17, 0
      %p128 = por %p126, %p127
      %p129 = scmp.ne.s32.totalorder %s118, %s121
      %p130 = scmp.eq.s32.totalorder %s22, 7
      %p131 = por %p129, %p130
      %p132 = scmp.ne.s32.totalorder %s121, %s122
      %p133 = scmp.eq.s32.totalorder %s22, 0
      %p134 = por %p132, %p133
      %p135 = scmp.ne.s32.totalorder %s121, %s122
      %p136 = scmp.eq.s32.totalorder %s23, 7
      %p137 = por %p135, %p136
      %p139 = scmp.ne.s32.totalorder %s122, %s138
      %p140 = scmp.eq.s32.totalorder %s23, 0
      %p141 = por %p139, %p140
      %p142 = scmp.le.s32.totalorder 1, %s17
      %p143 = scmp.lt.s32.totalorder %s17, 9
      %p144 = pnand %p142, %p143
      %p145 = pneg %p144
      // Predicated region
      $region9: #{tpu_custom_call.1} parent=5 // pred_check
        _
      $region10: #{tpu_custom_call.1} parent=5 // pred_check_branch
        %147 = sbr.rel (%p144) target = $region12
      $region11: #{tpu_custom_call.1} parent=5 // pred_region
        %s148 = ssub.s32 %s17, 1
      $region12: #{tpu_custom_call.1} parent=5 // pred_fallthru
        _
      %p149 = scmp.lt.s32.totalorder %s17, 8
      // Predicated region
      $region13: #{tpu_custom_call.1} parent=5 // pred_check
        %p150 = pneg %p149
      $region14: #{tpu_custom_call.1} parent=5 // pred_check_branch
        %152 = sbr.rel (%p150) target = $region16
      $region15: #{tpu_custom_call.1} parent=5 // pred_region
        // Predicated region
        $region17: #{tpu_custom_call.1} parent=15 // pred_check
          %p153 = pneg %p66
        $region18: #{tpu_custom_call.1} parent=15 // pred_check_branch
          %155 = sbr.rel (%p153) target = $region20
        $region19: #{tpu_custom_call.1} parent=15 // pred_region
          %s156 = sand.u32 %s56, 1
          %s157 = scalar_lea.sflag [#allocation5], %s156
          %s158 = sand.u32 %s56, 1
          %s159 = smul.addr %s158, 4
          %s160 = scalar_lea.vmem [#allocation4], %s159
          %s161 = smul.u32 %s24, 2
          %s162 = sadd.s32 %s161, %s26
          %p163 = scmp.lt.s32.totalorder %s162, 2
          %s164 = scalar_select %p163, %s162, 2
          %s166 = ssub.s32 64, 64
          %167 = vsyncadd %s157, %s166
          %s168 = smul.addr %s25, 3
          %s169 = sadd.s32 %s164, %s168
          %s170 = smul.addr %s169, 64
          %s171 = scalar_lea.hbm %s0, %s170
          %s173 = sshll.u32 %s160, 4
          %s174 = int_to_ptr.vmem [resolvable:$true] %s173
          %176 = dma.hbm_to_vmem [thread:$0]  %s171, 64, %s174, %s157
        $region20: #{tpu_custom_call.1} parent=15 // pred_fallthru
          _
        // Predicated region
        $region21: #{tpu_custom_call.1} parent=15 // pred_check
          %p177 = pneg %p102
        $region22: #{tpu_custom_call.1} parent=15 // pred_check_branch
          %179 = sbr.rel (%p177) target = $region24
        $region23: #{tpu_custom_call.1} parent=15 // pred_region
          %s180 = sand.u32 %s92, 1
          %s181 = scalar_lea.sflag [#allocation8], %s180
          %s182 = sand.u32 %s92, 1
          %s183 = scalar_lea.vmem [#allocation7], %s182
          %s184 = smul.u32 %s24, 2
          %s185 = sadd.s32 %s184, %s26
          %p186 = scmp.lt.s32.totalorder %s185, 2
          %s187 = scalar_select %p186, %s185, 2
          %s189 = ssub.s32 16, 16
          %190 = vsyncadd %s181, %s189
          %s191 = smul.addr %s25, 3
          %s192 = sadd.s32 %s187, %s191
          %s193 = smul.addr %s192, 16
          %s194 = scalar_lea.hbm %s1, %s193
          %s196 = sshll.u32 %s183, 4
          %s197 = int_to_ptr.vmem [resolvable:$true] %s196
          %199 = dma.hbm_to_vmem [thread:$0]  %s194, 16, %s197, %s181
        $region24: #{tpu_custom_call.1} parent=15 // pred_fallthru
          _
      $region16: #{tpu_custom_call.1} parent=5 // pred_fallthru
        _
      %p200 = scmp.le.s32.totalorder 1, %s17
      %p201 = scmp.lt.s32.totalorder %s17, 9
      %p202 = pnand %p200, %p201
      %p203 = pneg %p202
      // Predicated region
      $region25: #{tpu_custom_call.1} parent=5 // pred_check
        _
      $region26: #{tpu_custom_call.1} parent=5 // pred_check_branch
        %205 = sbr.rel (%p202) target = $region28
      $region27: #{tpu_custom_call.1} parent=5 // pred_region
        %s206 = ssub.s32 %s17, 1
        %s207 = sand.u32 %s59, 1
        %s208 = scalar_lea.sflag [#allocation5], %s207
        %s209 = sand.u32 %s59, 1
        %s210 = smul.addr %s209, 4
        %s211 = scalar_lea.vmem [#allocation4], %s210
        // Predicated region
        $region29: #{tpu_custom_call.1} parent=27 // pred_check
          %p212 = pneg %p72
        $region30: #{tpu_custom_call.1} parent=27 // pred_check_branch
          %214 = sbr.rel (%p212) target = $region32
        $region31: #{tpu_custom_call.1} parent=27 // pred_region
          %215 = dma.done %s208, 64
        $region32: #{tpu_custom_call.1} parent=27 // pred_fallthru
          _
        %s216 = sand.u32 %s95, 1
        %s217 = scalar_lea.sflag [#allocation8], %s216
        %s218 = sand.u32 %s95, 1
        %s219 = scalar_lea.vmem [#allocation7], %s218
        // Predicated region
        $region33: #{tpu_custom_call.1} parent=27 // pred_check
          %p220 = pneg %p108
        $region34: #{tpu_custom_call.1} parent=27 // pred_check_branch
          %222 = sbr.rel (%p220) target = $region36
        $region35: #{tpu_custom_call.1} parent=27 // pred_region
          %223 = dma.done %s217, 16
        $region36: #{tpu_custom_call.1} parent=27 // pred_fallthru
          _
        %s224 = sand.u32 %s59, 1
        %s225 = scalar_lea.sflag [#allocation5], %s224
        %s226 = sand.u32 %s59, 1
        %s227 = smul.addr %s226, 4
        %s228 = scalar_lea.vmem [#allocation4], %s227
        %p229 = pneg %p72
        %p230 = pneg %p69
        %s231 = sand.u32 %s95, 1
        %s232 = scalar_lea.sflag [#allocation8], %s231
        %s233 = sand.u32 %s95, 1
        %s234 = scalar_lea.vmem [#allocation7], %s233
        %p235 = pneg %p108
        %p236 = pneg %p105
        %p237 = pneg %p134
        %p238 = pneg %p131
        %s239 = sand.u32 %s121, 1
        %s240 = scalar_lea.sflag [#allocation6], %s239
        %s241 = sand.u32 %s121, 1
        %s242 = smul.addr %s241, 2
        %s243 = scalar_lea.vmem [#allocation9], %s242
        %s244 = smul.u32 %s27, 2
        %s245 = sadd.s32 %s244, %s29
        %p246 = scmp.lt.s32.totalorder %s245, 2
        %s247 = scalar_select %p246, %s245, 2
        %s248 = smul.u32 %s27, 2
        %s249 = sadd.s32 %s248, %s29
        %p250 = scmp.lt.s32.totalorder %s249, 2
        %s251 = scalar_select %p250, %s249, 2
        %p252 = scmp.eq.s32.totalorder %s28, 0
        %p253 = scmp.eq.s32.totalorder %s29, 0
        %p254 = pnand %p252, %p253
        %p255 = pneg %p254
        // Predicated region
        $region37: #{tpu_custom_call.1} parent=27 // pred_check
          _
        $region38: #{tpu_custom_call.1} parent=27 // pred_check_branch
          %257 = sbr.rel (%p254) target = $region40
        $region39: #{tpu_custom_call.1} parent=27 // pred_region
          %258 = vst [vmem:[#allocation2] sm:$0x1] 0.0
          %259 = vst [vmem:[#allocation3] sm:$0x1] 0.0
        $region40: #{tpu_custom_call.1} parent=27 // pred_fallthru
          _
        %v260 = vld [vmem:[%s211] sm:$0xf]
        %v261 = vld [vmem:[%s219] sm:$0x1]
        %vm262 = vcmask 1043456
        %v263 = vsel %vm262, %v260, -inf
        %v264 = vrot.slane %v263, 4
        %v265 = vmax.f32 %v263, %v264
        %v266 = vrot.slane %v265, 2
        %v267 = vmax.f32 %v265, %v266
        %v268 = vrot.slane %v267, 1
        %v269 = vmax.f32 %v267, %v268
        %v270 = vsub.f32 %v260, %v269
        %v271 = vmul.f32 %v270, 1.442695
        %v272 = vpow.pop %v271
        %v273 = vsel %vm262, %v272, 0.0
        %v274 = vrot.slane %v273, 4
        %v275 = vadd.f32 %v273, %v274
        %v276 = vrot.slane %v275, 2
        %v277 = vadd.f32 %v275, %v276
        %v278 = vrot.slane %v277, 1
        %v279 = vadd.f32 %v277, %v278
        %v280 = vlog2.pop %v279
        %v281 = vmul.f32 %v280, 0.6931472
        %v282 = vadd.f32 %v281, %v269
        %v283 = vlaneseq
        %v284 = vshrl.u32 %v283, 7
        %v285 = vlaneseq
        %v286 = vshrl.u32 %v285, 7
        %v287 = vsub.s32 0, %v286
        %v288 = vrot.slane %v261, %v287
        %vm289 = vcmp.eq.s32.totalorder %v284, %v288
        %v290 = vsel %vm289, %v260, 0.0
        %v291 = vsel %vm262, %v290, 0.0
        %v292 = vrot.slane %v291, 4
        %v293 = vadd.f32 %v291, %v292
        %v294 = vrot.slane %v293, 2
        %v295 = vadd.f32 %v293, %v294
        %v296 = vrot.slane %v295, 1
        %v297 = vadd.f32 %v295, %v296
        %s298 = smul.u32 %s27, 2
        %s299 = sadd.s32 %s298, %s29
        %s300 = smul.u32 %s299, 128
        %v301 = vlaneseq
        %v302 = vand.u32 %v301, 127
        %v303 = vstv %s300
        %v304 = vadd.s32 %v303, %v302
        %vm305 = vcmp.lt.s32.totalorder %v304, 324
        %vm306 = vcmp.ne.s32.totalorder %v261, 4294967295
        %vm307 = vmand %vm305, %vm306
        %v308 = vsub.f32 %v282, %v297
        %v309 = vsel %vm307, %v308, 0.0
        %v310 = vsel %vm307, 1.0, 0.0
        %v311 = vld [vmem:[#allocation2] sm:$0x1]
        %vm312 = vcmask 1040384
        %v313 = vsel %vm312, %v309, 0.0
        %314 = vadd.xlane.f32.xlu0 %v313
        %v315 = vpop.xlane.xlu0 %314
        %v316 = vrot.slane %v315, 4
        %v317 = vadd.f32 %v315, %v316
        %v318 = vrot.slane %v317, 2
        %v319 = vadd.f32 %v317, %v318
        %v320 = vrot.slane %v319, 1
        %v321 = vadd.f32 %v319, %v320
        %s322 = vtos %v321
        %v323 = vstv %s322
        %v324 = vadd.f32 %v311, %v323
        %325 = vst [vmem:[#allocation2] sm:$0x1] %v324
        %v326 = vld [vmem:[#allocation3] sm:$0x1]
        %v327 = vsel %vm312, %v310, 0.0
        %328 = vadd.xlane.f32.xlu0 %v327
        %v329 = vpop.xlane.xlu0 %328
        %v330 = vrot.slane %v329, 4
        %v331 = vadd.f32 %v329, %v330
        %v332 = vrot.slane %v331, 2
        %v333 = vadd.f32 %v331, %v332
        %v334 = vrot.slane %v333, 1
        %v335 = vadd.f32 %v333, %v334
        %s336 = vtos %v335
        %v337 = vstv %s336
        %v338 = vadd.f32 %v326, %v337
        %339 = vst [vmem:[#allocation3] sm:$0x1] %v338
        %p340 = scmp.eq.s32.totalorder %s28, 1
        %p341 = scmp.eq.s32.totalorder %s29, 1
        %p342 = pnand %p340, %p341
        %p343 = pneg %p342
        // Predicated region
        $region41: #{tpu_custom_call.1} parent=27 // pred_check
          _
        $region42: #{tpu_custom_call.1} parent=27 // pred_check_branch
          %345 = sbr.rel (%p342) target = $region44
        $region43: #{tpu_custom_call.1} parent=27 // pred_region
          %v346 = vld [vmem:[#allocation2] sm:$0x1]
          %347 = vst [vmem:[%s243] sm:$0x1] %v346
          %v348 = vld [vmem:[#allocation3] sm:$0x1]
          %349 = vst [vmem:[%s243 + $0x1] sm:$0x1] %v348
        $region44: #{tpu_custom_call.1} parent=27 // pred_fallthru
          _
        %s350 = sand.u32 %s121, 1
        %s351 = scalar_lea.sflag [#allocation6], %s350
        %s352 = sand.u32 %s121, 1
        %s353 = smul.addr %s352, 2
        %s354 = scalar_lea.vmem [#allocation9], %s353
        // Predicated region
        $region45: #{tpu_custom_call.1} parent=27 // pred_check
          %p355 = pneg %p131
        $region46: #{tpu_custom_call.1} parent=27 // pred_check_branch
          %357 = sbr.rel (%p355) target = $region48
        $region47: #{tpu_custom_call.1} parent=27 // pred_region
          %s359 = ssub.s32 32, 32
          %360 = vsyncadd %s351, %s359
          %s361 = smul.addr %s27, 32
          %s362 = scalar_lea.hbm %s2, %s361
          %s364 = sshll.u32 %s354, 4
          %s365 = int_to_ptr.vmem [resolvable:$true] %s364
          %367 = dma.vmem_to_hbm [thread:$0]  %s365, 32, %s362, %s351
        $region48: #{tpu_custom_call.1} parent=27 // pred_fallthru
          _
      $region28: #{tpu_custom_call.1} parent=5 // pred_fallthru
        _
      %p368 = scmp.le.s32.totalorder 2, %s17
      // Predicated region
      $region49: #{tpu_custom_call.1} parent=5 // pred_check
        %p369 = pneg %p368
      $region50: #{tpu_custom_call.1} parent=5 // pred_check_branch
        %371 = sbr.rel (%p369) target = $region52
      $region51: #{tpu_custom_call.1} parent=5 // pred_region
        %s372 = ssub.s32 %s17, 2
        // Predicated region
        $region53: #{tpu_custom_call.1} parent=51 // pred_check
          %p373 = pneg %p137
        $region54: #{tpu_custom_call.1} parent=51 // pred_check_branch
          %375 = sbr.rel (%p373) target = $region56
        $region55: #{tpu_custom_call.1} parent=51 // pred_region
          %s376 = sand.u32 %s122, 1
          %s377 = scalar_lea.sflag [#allocation6], %s376
          %s378 = sand.u32 %s122, 1
          %s379 = smul.addr %s378, 2
          %s380 = scalar_lea.vmem [#allocation9], %s379
          %381 = dma.done %s377, 32
        $region56: #{tpu_custom_call.1} parent=51 // pred_fallthru
          _
      $region52: #{tpu_custom_call.1} parent=5 // pred_fallthru
        _
    $region6: #{tpu_custom_call.1} parent=1 // loop_footer
      %s21 = sadd.s32 1, %s17
    $region7: #{tpu_custom_call.1} parent=1 // loop_footer_branch
      %16 = sbr.rel target = $region3
    $region8: #{tpu_custom_call.1} parent=1 // loop_exit
      _
    %382 = vsyncpa [#allocation5], 1
    %s383 = scalar_lea.sflag [#allocation5], 1
    %384 = vsyncpa %s383, 1
    %385 = vsyncpa [#allocation8], 1
    %s386 = scalar_lea.sflag [#allocation8], 1
    %387 = vsyncpa %s386, 1
    %388 = vsyncpa [#allocation6], 1
    %s389 = scalar_lea.sflag [#allocation6], 1
    %390 = vsyncpa %s389, 1

</llo_original>
